<compile_context>
chip_gen: v5e
topology: v5e:2x2
jax: 0.10.0
libtpu: 0.0.40
codegen_flags: <defaults>
</compile_context>

<pallas_src>
import functools

import jax
import jax.numpy as jnp
from jax.experimental import pallas as pl
from jax.experimental.pallas import tpu as pltpu


def _mse_kernel(t_ref, s_ref, out_ref, acc_ref, *, total_rows, tile_rows, inv_n):
    i = pl.program_id(0)
    last = pl.num_programs(0) - 1

    @pl.when(i == 0)
    def _init():
        acc_ref[...] = jnp.zeros_like(acc_ref)

    # Teacher is a constant target (detach in PyTorch) — forward-only here anyway.
    t = t_ref[...].astype(jnp.float32)
    s = s_ref[...].astype(jnp.float32)
    diff = s - t

    if total_rows % tile_rows != 0:
        # Ragged last tile: rows past the real extent contribute zero.
        row = jax.lax.broadcasted_iota(jnp.int32, diff.shape, 0) + i * tile_rows
        diff = jnp.where(row < total_rows, diff, 0.0)

    # Elementwise accumulate on the VPU; the one XLU reduce is paid in finalize.
    acc_ref[...] += diff * diff

    @pl.when(i == last)
    def _finalize():
        out_ref[0, 0] = jnp.sum(acc_ref[...]) * jnp.float32(inv_n)


def _choose_tile_rows(b, c, itemsize):
    """Pick a row-tile size that keeps 2 inputs x 2 pipeline buffers (+ f32 acc)
    comfortably under the smallest scoped-VMEM default (v5e: 16 MiB, v7x: 32 MiB
    of 64 MiB physical) while being large enough to amortize per-step overhead."""
    target_bytes_per_buffer = 2 * 1024 * 1024  # ~2 MiB per (TB, C) input buffer
    tb = target_bytes_per_buffer // max(1, c * itemsize)
    tb = min(tb, 1024)
    tb -= tb % 8          # second-to-last block dim must be a multiple of 8 ...
    tb = max(tb, 8)
    if tb >= b:
        return b          # ... or equal to the full array extent (always legal)
    return tb


def attention_layer_loss(teacher_attn: jax.Array, student_attn: jax.Array) -> jax.Array:
    """MSE loss between teacher_attn and student_attn, shape [1,]."""
    assert teacher_attn.shape == student_attn.shape
    assert teacher_attn.ndim == 2
    b, c = teacher_attn.shape

    itemsize = max(jnp.dtype(teacher_attn.dtype).itemsize,
                   jnp.dtype(student_attn.dtype).itemsize)
    tb = _choose_tile_rows(b, c, itemsize)
    steps = pl.cdiv(b, tb)
    # Exact divisor computed host-side in float64, applied as a single f32 mul.
    inv_n = 1.0 / float(b * c)

    kernel = functools.partial(
        _mse_kernel, total_rows=b, tile_rows=tb, inv_n=inv_n)

    loss = pl.pallas_call(
        kernel,
        out_shape=jax.ShapeDtypeStruct((1, 1), jnp.float32),
        grid=(steps,),
        in_specs=[
            # Full-C blocks keep lanes dense for arbitrary channel counts
            # (C=32 here); rows are tiled for DMA/compute overlap.
            pl.BlockSpec((tb, c), lambda i: (i, 0)),
            pl.BlockSpec((tb, c), lambda i: (i, 0)),
        ],
        out_specs=pl.BlockSpec(
            (1, 1), lambda i: (0, 0), memory_space=pltpu.MemorySpace.SMEM),
        scratch_shapes=[pltpu.VMEM((tb, c), jnp.float32)],
        compiler_params=pltpu.CompilerParams(
            dimension_semantics=("arbitrary",)),  # reduction axis
    )(teacher_attn, student_attn)

    return loss.reshape((1,))


if __name__ == "__main__":
    key = jax.random.PRNGKey(0)
    k_t, k_s = jax.random.split(key)

    batch_size, channels = 8, 32
    teacher_attn = jax.random.normal(k_t, (batch_size, channels), dtype=jnp.float32)
    student_attn = jax.random.normal(k_s, (batch_size, channels), dtype=jnp.float32)

    loss = attention_layer_loss(teacher_attn, student_attn)
    jax.block_until_ready(loss)

    # Sanity check vs. plain-JAX reference (F.mse_loss with reduction='mean').
    ref = jnp.mean((student_attn - teacher_attn) ** 2).reshape((1,))
    assert loss.shape == (1,)
    assert jnp.allclose(loss, ref, rtol=1e-6, atol=1e-6), (loss, ref)

    # Also exercise a larger, non-divisible, bf16 case (ragged last tile + in-kernel cast).
    k_t2, k_s2 = jax.random.split(k_s)
    t2 = jax.random.normal(k_t2, (1000, 384), dtype=jnp.bfloat16)
    s2 = jax.random.normal(k_s2, (1000, 384), dtype=jnp.bfloat16)
    loss2 = attention_layer_loss(t2, s2)
    jax.block_until_ready(loss2)
    ref2 = jnp.mean(
        (s2.astype(jnp.float32) - t2.astype(jnp.float32)) ** 2).reshape((1,))
    assert jnp.allclose(loss2, ref2, rtol=1e-3, atol=1e-3), (loss2, ref2)

    print("KERNEL_OK")
</pallas_src>

<mosaic_0001>
module attributes {stable_mosaic.version = 11 : i64} {
  func.func @_mse_kernel(%arg0: i32, %arg1: memref<8x32xf32, #tpu.memory_space<vmem>>, %arg2: memref<8x32xf32, #tpu.memory_space<vmem>>, %arg3: memref<1x1xf32, #tpu.memory_space<smem>>, %arg4: memref<8x32xf32, #tpu.memory_space<vmem>>) attributes {dimension_semantics = [#tpu.dimension_semantics<arbitrary>], iteration_bounds = array<i64: 1>, scalar_prefetch = 0 : i64, scratch_operands = 1 : i64, tpu.core_type = #tpu.core_type<tc>, window_params = [{transform_indices = @transform_0, window_bounds = array<i64: 8, 32>}, {transform_indices = @transform_1, window_bounds = array<i64: 8, 32>}, {transform_indices = @transform_2, window_bounds = array<i64: 1, 1>}]} {
    %c0_i32 = arith.constant 0 : i32
    %0 = arith.cmpi eq, %arg0, %c0_i32 : i32
    %1 = arith.extui %0 : i1 to i32
    %c0_i32_0 = arith.constant 0 : i32
    %2 = arith.cmpi ne, %1, %c0_i32_0 : i32
    scf.if %2 {
      %cst = arith.constant 0.000000e+00 : f32
      %13 = vector.broadcast %cst : f32 to vector<8x32xf32>
      %c0_10 = arith.constant 0 : index
      %c0_11 = arith.constant 0 : index
      %14 = vector.load %arg4[%c0_10, %c0_11] : memref<8x32xf32, #tpu.memory_space<vmem>>, vector<8x32xf32>
      tpu.vector_store %arg4[%c0_10, %c0_11], %13 {strides = array<i32>} : memref<8x32xf32, #tpu.memory_space<vmem>>, vector<8x32xf32>,
    } else {
    }
    %c0 = arith.constant 0 : index
    %c0_1 = arith.constant 0 : index
    %3 = vector.load %arg1[%c0, %c0_1] : memref<8x32xf32, #tpu.memory_space<vmem>>, vector<8x32xf32>
    %c0_2 = arith.constant 0 : index
    %c0_3 = arith.constant 0 : index
    %4 = vector.load %arg2[%c0_2, %c0_3] : memref<8x32xf32, #tpu.memory_space<vmem>>, vector<8x32xf32>
    %5 = arith.subf %4, %3 : vector<8x32xf32>
    %c0_4 = arith.constant 0 : index
    %c0_5 = arith.constant 0 : index
    %6 = vector.load %arg4[%c0_4, %c0_5] : memref<8x32xf32, #tpu.memory_space<vmem>>, vector<8x32xf32>
    %7 = arith.mulf %5, %5 : vector<8x32xf32>
    %8 = arith.addf %6, %7 : vector<8x32xf32>
    %c0_6 = arith.constant 0 : index
    %c0_7 = arith.constant 0 : index
    %9 = vector.load %arg4[%c0_6, %c0_7] : memref<8x32xf32, #tpu.memory_space<vmem>>, vector<8x32xf32>
    tpu.vector_store %arg4[%c0_6, %c0_7], %8 {strides = array<i32>} : memref<8x32xf32, #tpu.memory_space<vmem>>, vector<8x32xf32>,
    %c0_i32_8 = arith.constant 0 : i32
    %10 = arith.cmpi eq, %arg0, %c0_i32_8 : i32
    %11 = arith.extui %10 : i1 to i32
    %c0_i32_9 = arith.constant 0 : i32
    %12 = arith.cmpi ne, %11, %c0_i32_9 : i32
    scf.if %12 {
      %c0_10 = arith.constant 0 : index
      %c0_11 = arith.constant 0 : index
      %13 = vector.load %arg4[%c0_10, %c0_11] : memref<8x32xf32, #tpu.memory_space<vmem>>, vector<8x32xf32>
      %14 = vector.shape_cast %13 : vector<8x32xf32> to vector<1x8x32xf32>
      %cst = arith.constant dense<0.000000e+00> : vector<1xf32>
      %15 = vector.multi_reduction <add>, %14, %cst [1, 2] : vector<1x8x32xf32> to vector<1xf32>
      %16 = vector.shape_cast %15 : vector<1xf32> to vector<1x1x1xf32>
      %17 = vector.extract %16[0, 0, 0] : f32 from vector<1x1x1xf32>
      %cst_12 = arith.constant 3.906250e-03 : f32
      %18 = arith.mulf %17, %cst_12 : f32
      %c0_13 = arith.constant 0 : index
      %c0_14 = arith.constant 0 : index
      %19 = memref.load %arg3[%c0_13, %c0_14] : memref<1x1xf32, #tpu.memory_space<smem>>
      memref.store %18, %arg3[%c0_13, %c0_14] : memref<1x1xf32, #tpu.memory_space<smem>>
    } else {
    }
    return
  }
  func.func @transform_0(%arg0: i32) -> (i32, i32) {
    %c0_i32 = arith.constant 0 : i32
    %c0_i32_0 = arith.constant 0 : i32
    return %arg0, %c0_i32 : i32, i32
  }
  func.func @transform_1(%arg0: i32) -> (i32, i32) {
    %c0_i32 = arith.constant 0 : i32
    %c0_i32_0 = arith.constant 0 : i32
    return %arg0, %c0_i32 : i32, i32
  }
  func.func @transform_2(%arg0: i32) -> (i32, i32) {
    %c0_i32 = arith.constant 0 : i32
    %c0_i32_0 = arith.constant 0 : i32
    %c0_i32_1 = arith.constant 0 : i32
    return %c0_i32, %c0_i32_0 : i32, i32
  }
}

</mosaic_0001>

<llo_original>
// kernel: tpu_custom_call.1
$region0: #{tpu_custom_call.1}
  #allocation0 [shape = 'u32[]', space=smem, size = 0x4, offset = 0x4, fixed_abs, tag = 'smem constant byte address 0x4 - core index']
  #allocation1 [shape = 'u32[72,128]{1,0:T(1,128)}', space=vmem, size = 0x9000, scoped, tag = 'internal scratch']
  #allocation2 [shape = 'f32[8,32]{1,0:T(8,128)}', space=vmem, size = 0x1000, scoped, tag = 'scratch operand']
  %s0 = inlined_call_operand.hbm [shape: f32[8,32], index: 0, kind: input, shape index: {}]
  %s1 = inlined_call_operand.hbm [shape: f32[8,32], index: 1, kind: input, shape index: {}]
  %s2 = inlined_call_operand.hbm [shape: f32[1,1], index: 2, kind: output, shape index: {}]
  %s3 = sld [smem:[#allocation0]]
  $region34: #{tpu_custom_call.1} parent=0
    _
  %s5 = ssub.s32 1, %s3
  %s6 = scalar_select 0, %s5, %s3
  $region1: #{tpu_custom_call.1} parent=0
    #allocation3 [shape = 'u8[4096]{0}', space=vmem, size = 0x1000, scoped, tag = 'input window, operand 0, single buffered']
    #allocation4 [shape = 's32[1]{0}', space=sflag, size = 0x4, scoped, tag = 'scoped memory for tpu_custom_call.1']
    #allocation5 [shape = 's32[1]{0}', space=sflag, size = 0x4, scoped, tag = 'scoped memory for tpu_custom_call.1']
    #allocation6 [shape = 'u8[4096]{0}', space=vmem, size = 0x1000, scoped, tag = 'input window, operand 1, single buffered']
    #allocation7 [shape = 's32[1]{0}', space=sflag, size = 0x4, scoped, tag = 'scoped memory for tpu_custom_call.1']
    #allocation8 [shape = 'u8[512]{0}', space=smem, size = 0x200, scoped, tag = 'output window, operand 0, single buffered']
    %7 = vsyncpa [#allocation4], 0
    %8 = vsyncpa [#allocation7], 0
    %9 = vsyncpa [#allocation5], 0
    // Predicated region
    $region2: #{tpu_custom_call.1} parent=1 // pred_check
      _
    $region3: #{tpu_custom_call.1} parent=1 // pred_check_branch
      %11 = sbr.rel (0) target = $region5
    $region4: #{tpu_custom_call.1} parent=1 // pred_region
      %13 = vsyncadd [#allocation4], 0
      %s15 = sshll.u32 %s0, 4
      %s16 = int_to_ptr.hbm [resolvable:$true] %s15
      %s17 = sshll.u32 [#allocation3], 4
      %s18 = int_to_ptr.vmem [resolvable:$true] %s17
      %20 = dma.hbm_to_vmem [thread:$0]  %s16, 128, %s18, [#allocation4]
    $region5: #{tpu_custom_call.1} parent=1 // pred_fallthru
      _
    // Predicated region
    $region6: #{tpu_custom_call.1} parent=1 // pred_check
      _
    $region7: #{tpu_custom_call.1} parent=1 // pred_check_branch
      %22 = sbr.rel (0) target = $region9
    $region8: #{tpu_custom_call.1} parent=1 // pred_region
      %24 = vsyncadd [#allocation7], 0
      %s26 = sshll.u32 %s1, 4
      %s27 = int_to_ptr.hbm [resolvable:$true] %s26
      %s28 = sshll.u32 [#allocation6], 4
      %s29 = int_to_ptr.vmem [resolvable:$true] %s28
      %31 = dma.hbm_to_vmem [thread:$0]  %s27, 128, %s29, [#allocation7]
    $region9: #{tpu_custom_call.1} parent=1 // pred_fallthru
      _
    // Predicated region
    $region10: #{tpu_custom_call.1} parent=1 // pred_check
      _
    $region11: #{tpu_custom_call.1} parent=1 // pred_check_branch
      %33 = sbr.rel (0) target = $region13
    $region12: #{tpu_custom_call.1} parent=1 // pred_region
      %35 = dma.done [#allocation4], 128
    $region13: #{tpu_custom_call.1} parent=1 // pred_fallthru
      _
    // Predicated region
    $region14: #{tpu_custom_call.1} parent=1 // pred_check
      _
    $region15: #{tpu_custom_call.1} parent=1 // pred_check_branch
      %37 = sbr.rel (0) target = $region17
    $region16: #{tpu_custom_call.1} parent=1 // pred_region
      %39 = dma.done [#allocation7], 128
    $region17: #{tpu_custom_call.1} parent=1 // pred_fallthru
      _
    %p40 = scmp.eq.s32.totalorder 0, 0
    // Predicated region
    $region18: #{tpu_custom_call.1} parent=1 // pred_check
      %p41 = pneg %p40
    $region19: #{tpu_custom_call.1} parent=1 // pred_check_branch
      %43 = sbr.rel (%p41) target = $region21
    $region20: #{tpu_custom_call.1} parent=1 // pred_region
      %vm44 = vcmask 261120
      %45 = vst.msk [vmem:[#allocation2] sm:$0xff] %vm44, 0.0
    $region21: #{tpu_custom_call.1} parent=1 // pred_fallthru
      _
    %v46 = vld [vmem:[#allocation3] sm:$0xff]
    %v47 = vld [vmem:[#allocation6] sm:$0xff]
    %v48 = vsub.f32 %v47, %v46
    %v49 = vld [vmem:[#allocation2] sm:$0xff]
    %v50 = vmul.f32 %v48, %v48
    %v51 = vadd.f32 %v49, %v50
    %vm52 = vcmask 261120
    %53 = vst.msk [vmem:[#allocation2] sm:$0xff] %vm52, %v51
    // Predicated region
    $region22: #{tpu_custom_call.1} parent=1 // pred_check
      %p54 = pneg %p40
    $region23: #{tpu_custom_call.1} parent=1 // pred_check_branch
      %56 = sbr.rel (%p54) target = $region25
    $region24: #{tpu_custom_call.1} parent=1 // pred_region
      %v57 = vld [vmem:[#allocation2] sm:$0xff]
      %v58 = vsel %vm52, %v57, 0.0
      %59 = vadd.xlane.f32.xlu0 %v58
      %v60 = vpop.xlane.xlu0 %59
      %v61 = vrot.slane %v60, 4
      %v62 = vadd.f32 %v60, %v61
      %v63 = vrot.slane %v62, 2
      %v64 = vadd.f32 %v62, %v63
      %v65 = vrot.slane %v64, 1
      %v66 = vadd.f32 %v64, %v65
      %s67 = vtos %v66
      %s68 = smul.f32 %s67, 0.00390625
      %s69 = scalar_lea.smem [#allocation8], 0
      %70 = sst [smem:[%s69]] %s68
    $region25: #{tpu_custom_call.1} parent=1 // pred_fallthru
      _
    // Predicated region
    $region26: #{tpu_custom_call.1} parent=1 // pred_check
      _
    $region27: #{tpu_custom_call.1} parent=1 // pred_check_branch
      %72 = sbr.rel (0) target = $region29
    $region28: #{tpu_custom_call.1} parent=1 // pred_region
      %74 = vsyncadd [#allocation5], 0
      %s76 = sshll.u32 %s2, 4
      %s77 = int_to_ptr.hbm [resolvable:$true] %s76
      %79 = dma.smem_to_hbm [#allocation8], 16, %s77, [#allocation5]
    $region29: #{tpu_custom_call.1} parent=1 // pred_fallthru
      _
    // Predicated region
    $region30: #{tpu_custom_call.1} parent=1 // pred_check
      _
    $region31: #{tpu_custom_call.1} parent=1 // pred_check_branch
      %81 = sbr.rel (0) target = $region33
    $region32: #{tpu_custom_call.1} parent=1 // pred_region
      %83 = dma.done [#allocation5], 16
    $region33: #{tpu_custom_call.1} parent=1 // pred_fallthru
      _
    %84 = sfence
    %85 = vsyncpa [#allocation4], 1
    %86 = vsyncpa [#allocation7], 1
    %87 = vsyncpa [#allocation5], 1

</llo_original>
